<compile_context>
chip_gen: v5e
topology: v5e:2x2
jax: 0.10.0
libtpu: 0.0.40
codegen_flags: <defaults>
</compile_context>

<pallas_src>
import math

import numpy as np

import jax
import jax.numpy as jnp
from jax.experimental import pallas as pl
from jax.experimental.pallas import tpu as pltpu

# Problem sizes (small, consistent with the module: n_models models -> n_classes).
BATCH = 2
N_MODELS = 4                    # sequence length of the self-attention
N_CLASSES = 8                   # embed_dim (divisible by 4 heads)
N_HEADS = 4
HEAD_DIM = N_CLASSES // N_HEADS  # == 2 (the lane-permutation trick below relies on this)
HIDDEN = 32                     # hidden_dim of the meta_net
N_MARKET = 10                   # use_market_features=True adds 10 features
IN_DIM = N_MODELS * N_CLASSES + N_MARKET


def _meta_learner_kernel(x_ref, mf_ref, r_rep_ref, t_rep_ref, g_blk_ref, g_out_ref,
                         wqkv_ref, bqkv_ref, wo_ref, bo_ref,
                         w1p_ref, w1m_ref, b1_ref, w2_ref, b2_ref, w3_ref, b3_ref,
                         out_ref):
    """Whole forward pass in one invocation (tiny shapes -> single tile, everything 2D)."""
    f32 = jnp.float32
    x = x_ref[...]                                          # [B*S, E], rows ordered (b, s)

    # Fused, batched QKV projection. The wrapper already permuted the output lanes to
    # [d0 of heads 0..3 | d1 of heads 0..3] and folded 1/sqrt(head_dim) into the Q part.
    qkv = jnp.dot(x, wqkv_ref[...], preferred_element_type=f32) + bqkv_ref[...]   # [B*S, 3E]
    q = qkv[:, :N_CLASSES]                                  # [B*S, E]
    kv = qkv[:, N_CLASSES:]                                 # [B*S, 2E]  (k | v)

    # Replicate rows to every (b, i, j) combination with constant 0/1 matrices (1 MXU push each).
    q_rep = jnp.dot(r_rep_ref[...], q, preferred_element_type=f32)    # [B*S*S, E]: row (b,i,j) -> q[b,i]
    kv_rep = jnp.dot(t_rep_ref[...], kv, preferred_element_type=f32)  # [B*S*S, 2E]: row (b,i,j) -> k/v[b,j]
    k_rep = kv_rep[:, :N_CLASSES]
    v_rep = kv_rep[:, N_CLASSES:]

    # All-head scaled dot-product scores in one shot: with the permuted lane layout the
    # per-head 2-element dot is simply (d0 half) + (d1 half).
    prod = q_rep * k_rep                                    # [B*S*S, E]
    scores = prod[:, :N_HEADS] + prod[:, N_HEADS:]          # [B*S*S, H]

    # Softmax over keys j (= groups of S consecutive rows). Subtracting the global max is
    # mathematically identical to the per-row max and keeps exp() well behaved.
    m = jnp.max(scores, axis=-1, keepdims=True)             # [B*S*S, 1]
    m = jnp.max(m, axis=0, keepdims=True)                   # [1, 1]
    e = jnp.exp(scores - m)
    denom = jnp.dot(g_blk_ref[...], e, preferred_element_type=f32)    # per-(b,i) sum, replicated per row
    p = e * pl.reciprocal(denom, approx=True)               # [B*S*S, H]

    # Attention context (still in the permuted lane basis): weight V and sum over keys.
    p2 = jnp.concatenate([p, p], axis=1)                    # head prob for both d0/d1 lanes, [B*S*S, E]
    ctx = jnp.dot(g_out_ref[...], p2 * v_rep, preferred_element_type=f32)   # [B*S, E]

    # out_proj (its weight rows were permuted in the wrapper to accept the permuted ctx basis).
    attended = jnp.dot(ctx, wo_ref[...], preferred_element_type=f32) + bo_ref[...]   # [B*S, E]

    # flat_preds = attended.view(batch, -1): row-major flatten of (S, E) per batch element.
    flat = jnp.concatenate(
        [jnp.concatenate([attended[b * N_MODELS + s: b * N_MODELS + s + 1, :]
                          for s in range(N_MODELS)], axis=1)
         for b in range(BATCH)], axis=0)                    # [B, S*E]

    # meta_net: Linear -> ReLU -> (Dropout) -> Linear -> ReLU -> (Dropout) -> Linear.
    # W1 was split in the wrapper, so no concat of [flat, market_features] is needed.
    h1 = jnp.maximum(jnp.dot(flat, w1p_ref[...], preferred_element_type=f32)
                     + jnp.dot(mf_ref[...], w1m_ref[...], preferred_element_type=f32)
                     + b1_ref[...], 0.0)                    # [B, HIDDEN]
    h2 = jnp.maximum(jnp.dot(h1, w2_ref[...], preferred_element_type=f32) + b2_ref[...], 0.0)
    out_ref[...] = jnp.dot(h2, w3_ref[...], preferred_element_type=f32) + b3_ref[...]   # [B, C]


def build_index_constants():
    """Constant 0/1 replication / group-sum matrices (wrapper-side layout plumbing is free)."""
    n_pairs = BATCH * N_MODELS * N_MODELS
    n_rows = BATCH * N_MODELS
    r = np.arange(n_pairs)
    b = r // (N_MODELS * N_MODELS)
    i = (r // N_MODELS) % N_MODELS
    j = r % N_MODELS
    cols = np.arange(n_rows)
    r_rep = (b * N_MODELS + i)[:, None] == cols[None, :]          # row (b,i,j) picks q row (b,i)
    t_rep = (b * N_MODELS + j)[:, None] == cols[None, :]          # row (b,i,j) picks k/v row (b,j)
    g_blk = (r[:, None] // N_MODELS) == (r[None, :] // N_MODELS)  # per-(b,i) group sum, replicated
    g_out = cols[:, None] == (r[None, :] // N_MODELS)             # per-(b,i) group sum -> one row
    return (jnp.asarray(r_rep, jnp.float32), jnp.asarray(t_rep, jnp.float32),
            jnp.asarray(g_blk, jnp.float32), jnp.asarray(g_out, jnp.float32))


def init_torch_params(key):
    """PyTorch-layout parameters (weights are [out, in]); uniform(-1/sqrt(fan_in), 1/sqrt(fan_in))."""
    E = N_CLASSES

    def unif(k, shape, fan_in):
        bound = 1.0 / math.sqrt(fan_in)
        return jax.random.uniform(k, shape, jnp.float32, -bound, bound)

    ks = jax.random.split(key, 10)
    return dict(
        in_proj_w=unif(ks[0], (3 * E, E), E),     # MultiheadAttention in_proj_weight
        in_proj_b=unif(ks[1], (3 * E,), E),
        out_w=unif(ks[2], (E, E), E),             # out_proj
        out_b=unif(ks[3], (E,), E),
        w1=unif(ks[4], (HIDDEN, IN_DIM), IN_DIM),          # meta_net Linear 1
        b1=unif(ks[5], (HIDDEN,), IN_DIM),
        w2=unif(ks[6], (HIDDEN // 2, HIDDEN), HIDDEN),     # meta_net Linear 2
        b2=unif(ks[7], (HIDDEN // 2,), HIDDEN),
        w3=unif(ks[8], (N_CLASSES, HIDDEN // 2), HIDDEN // 2),  # meta_net Linear 3
        b3=unif(ks[9], (N_CLASSES,), HIDDEN // 2),
    )


def pack_params(p):
    """Repack PyTorch-layout weights for the kernel: transpose, permute head lanes, fuse QKV,
    fold the softmax scale into Q, split W1 into prediction / market blocks."""
    E = N_CLASSES
    # New lane p takes original channel perm[p]: [d0 of heads 0..3 | d1 of heads 0..3].
    perm = jnp.array([2 * h for h in range(N_HEADS)] + [2 * h + 1 for h in range(N_HEADS)],
                     dtype=jnp.int32)
    scale = 1.0 / math.sqrt(HEAD_DIM)

    wq, wk, wv = p["in_proj_w"][:E], p["in_proj_w"][E:2 * E], p["in_proj_w"][2 * E:]
    bq, bk, bv = p["in_proj_b"][:E], p["in_proj_b"][E:2 * E], p["in_proj_b"][2 * E:]

    wq_t = (wq.T)[:, perm] * scale
    bq_p = bq[perm] * scale
    wk_t = (wk.T)[:, perm]
    bk_p = bk[perm]
    wv_t = (wv.T)[:, perm]
    bv_p = bv[perm]
    w_qkv = jnp.concatenate([wq_t, wk_t, wv_t], axis=1)            # [E, 3E]
    b_qkv = jnp.concatenate([bq_p, bk_p, bv_p])[None, :]           # [1, 3E]

    w_o = (p["out_w"].T)[perm, :]                                  # rows permuted -> accepts permuted ctx
    b_o = p["out_b"][None, :]

    w1p = p["w1"][:, :N_MODELS * E].T                              # [S*E, HIDDEN]
    w1m = p["w1"][:, N_MODELS * E:].T                              # [N_MARKET, HIDDEN]
    b1 = p["b1"][None, :]
    w2 = p["w2"].T
    b2 = p["b2"][None, :]
    w3 = p["w3"].T
    b3 = p["b3"][None, :]
    return (w_qkv, b_qkv, w_o, b_o, w1p, w1m, b1, w2, b2, w3, b3)


def meta_learner_forward(model_predictions, market_features, packed, constants):
    # Row-major flatten of (batch, n_models) outside the kernel (free layout plumbing).
    x2 = model_predictions.reshape(BATCH * N_MODELS, N_CLASSES)
    args = (x2, market_features) + constants + packed
    in_specs = [pl.BlockSpec(memory_space=pltpu.MemorySpace.VMEM) for _ in range(len(args))]
    return pl.pallas_call(
        _meta_learner_kernel,
        out_shape=jax.ShapeDtypeStruct((BATCH, N_CLASSES), jnp.float32),
        in_specs=in_specs,
        out_specs=pl.BlockSpec(memory_space=pltpu.MemorySpace.VMEM),
    )(*args)


if __name__ == "__main__":
    key = jax.random.PRNGKey(0)
    k_x, k_mf, k_p = jax.random.split(key, 3)
    # model_predictions: [batch, n_models, n_classes]; market_features: [batch, 10]
    model_predictions = jax.random.normal(k_x, (BATCH, N_MODELS, N_CLASSES), jnp.float32)
    market_features = jax.random.normal(k_mf, (BATCH, N_MARKET), jnp.float32)

    torch_params = init_torch_params(k_p)
    packed = pack_params(torch_params)
    constants = build_index_constants()

    out = meta_learner_forward(model_predictions, market_features, packed, constants)
    jax.block_until_ready(out)
    assert out.shape == (BATCH, N_CLASSES) and out.dtype == jnp.float32
    print("KERNEL_OK")
</pallas_src>

<mosaic_0001>
module attributes {stable_mosaic.version = 11 : i64} {
  func.func @_meta_learner_kernel(%arg0: memref<8x8xf32, #tpu.memory_space<vmem>>, %arg1: memref<2x10xf32, #tpu.memory_space<vmem>>, %arg2: memref<32x8xf32, #tpu.memory_space<vmem>>, %arg3: memref<32x8xf32, #tpu.memory_space<vmem>>, %arg4: memref<32x32xf32, #tpu.memory_space<vmem>>, %arg5: memref<8x32xf32, #tpu.memory_space<vmem>>, %arg6: memref<8x24xf32, #tpu.memory_space<vmem>>, %arg7: memref<1x24xf32, #tpu.memory_space<vmem>>, %arg8: memref<8x8xf32, #tpu.memory_space<vmem>>, %arg9: memref<1x8xf32, #tpu.memory_space<vmem>>, %arg10: memref<32x32xf32, #tpu.memory_space<vmem>>, %arg11: memref<10x32xf32, #tpu.memory_space<vmem>>, %arg12: memref<1x32xf32, #tpu.memory_space<vmem>>, %arg13: memref<32x16xf32, #tpu.memory_space<vmem>>, %arg14: memref<1x16xf32, #tpu.memory_space<vmem>>, %arg15: memref<16x8xf32, #tpu.memory_space<vmem>>, %arg16: memref<1x8xf32, #tpu.memory_space<vmem>>, %arg17: memref<2x8xf32, #tpu.memory_space<vmem>>) attributes {dimension_semantics = [], scalar_prefetch = 0 : i64, scratch_operands = 0 : i64, tpu.core_type = #tpu.core_type<tc>} {
    %c0 = arith.constant 0 : index
    %c0_0 = arith.constant 0 : index
    %0 = vector.load %arg0[%c0, %c0_0] : memref<8x8xf32, #tpu.memory_space<vmem>>, vector<8x8xf32>
    %c0_1 = arith.constant 0 : index
    %c0_2 = arith.constant 0 : index
    %1 = vector.load %arg6[%c0_1, %c0_2] : memref<8x24xf32, #tpu.memory_space<vmem>>, vector<8x24xf32>
    %cst = arith.constant dense<0.000000e+00> : vector<8x24xf32>
    %2 = tpu.matmul %0, %1, %cst {dimension_numbers = #tpu.dot_dimension_numbers<[1], [0], [0], [1], [0, 0, 1, 1], [], []>} : vector<8x8xf32>, vector<8x24xf32>, vector<8x24xf32> -> vector<8x24xf32>
    %c0_3 = arith.constant 0 : index
    %c0_4 = arith.constant 0 : index
    %3 = vector.load %arg7[%c0_3, %c0_4] : memref<1x24xf32, #tpu.memory_space<vmem>>, vector<1x24xf32>
    %4 = vector.broadcast %3 : vector<1x24xf32> to vector<8x24xf32>
    %5 = arith.addf %2, %4 : vector<8x24xf32>
    %6 = vector.extract_strided_slice %5 {offsets = [0, 0], sizes = [8, 8], strides = [1, 1]} : vector<8x24xf32> to vector<8x8xf32>
    %7 = vector.extract_strided_slice %5 {offsets = [0, 8], sizes = [8, 16], strides = [1, 1]} : vector<8x24xf32> to vector<8x16xf32>
    %c0_5 = arith.constant 0 : index
    %c0_6 = arith.constant 0 : index
    %8 = vector.load %arg2[%c0_5, %c0_6] : memref<32x8xf32, #tpu.memory_space<vmem>>, vector<32x8xf32>
    %cst_7 = arith.constant dense<0.000000e+00> : vector<32x8xf32>
    %9 = tpu.matmul %8, %6, %cst_7 {dimension_numbers = #tpu.dot_dimension_numbers<[1], [0], [0], [1], [0, 0, 1, 1], [], []>} : vector<32x8xf32>, vector<8x8xf32>, vector<32x8xf32> -> vector<32x8xf32>
    %c0_8 = arith.constant 0 : index
    %c0_9 = arith.constant 0 : index
    %10 = vector.load %arg3[%c0_8, %c0_9] : memref<32x8xf32, #tpu.memory_space<vmem>>, vector<32x8xf32>
    %cst_10 = arith.constant dense<0.000000e+00> : vector<32x16xf32>
    %11 = tpu.matmul %10, %7, %cst_10 {dimension_numbers = #tpu.dot_dimension_numbers<[1], [0], [0], [1], [0, 0, 1, 1], [], []>} : vector<32x8xf32>, vector<8x16xf32>, vector<32x16xf32> -> vector<32x16xf32>
    %12 = vector.extract_strided_slice %11 {offsets = [0, 0], sizes = [32, 8], strides = [1, 1]} : vector<32x16xf32> to vector<32x8xf32>
    %13 = vector.extract_strided_slice %11 {offsets = [0, 8], sizes = [32, 8], strides = [1, 1]} : vector<32x16xf32> to vector<32x8xf32>
    %14 = arith.mulf %9, %12 : vector<32x8xf32>
    %15 = vector.extract_strided_slice %14 {offsets = [0, 0], sizes = [32, 4], strides = [1, 1]} : vector<32x8xf32> to vector<32x4xf32>
    %16 = vector.extract_strided_slice %14 {offsets = [0, 4], sizes = [32, 4], strides = [1, 1]} : vector<32x8xf32> to vector<32x4xf32>
    %17 = arith.addf %15, %16 : vector<32x4xf32>
    %cst_11 = arith.constant dense<0xFF800000> : vector<32xf32>
    %18 = vector.multi_reduction <maximumf>, %17, %cst_11 [1] : vector<32x4xf32> to vector<32xf32>
    %19 = vector.shape_cast %18 : vector<32xf32> to vector<32x1xf32>
    %cst_12 = arith.constant dense<0xFF800000> : vector<1xf32>
    %20 = vector.multi_reduction <maximumf>, %19, %cst_12 [0] : vector<32x1xf32> to vector<1xf32>
    %21 = vector.shape_cast %20 : vector<1xf32> to vector<1x1xf32>
    %22 = vector.broadcast %21 : vector<1x1xf32> to vector<32x4xf32>
    %23 = arith.subf %17, %22 : vector<32x4xf32>
    %24 = math.exp %23 : vector<32x4xf32>
    %c0_13 = arith.constant 0 : index
    %c0_14 = arith.constant 0 : index
    %25 = vector.load %arg4[%c0_13, %c0_14] : memref<32x32xf32, #tpu.memory_space<vmem>>, vector<32x32xf32>
    %cst_15 = arith.constant dense<0.000000e+00> : vector<32x4xf32>
    %26 = tpu.matmul %25, %24, %cst_15 {dimension_numbers = #tpu.dot_dimension_numbers<[1], [0], [0], [1], [0, 0, 1, 1], [], []>} : vector<32x32xf32>, vector<32x4xf32>, vector<32x4xf32> -> vector<32x4xf32>
    %27 = tpu.reciprocal %26 {approx = true} : vector<32x4xf32> -> vector<32x4xf32>
    %28 = arith.mulf %24, %27 : vector<32x4xf32>
    %29 = tpu.concatenate %28, %28 in 1 : vector<32x4xf32>, vector<32x4xf32> -> vector<32x8xf32>
    %c0_16 = arith.constant 0 : index
    %c0_17 = arith.constant 0 : index
    %30 = vector.load %arg5[%c0_16, %c0_17] : memref<8x32xf32, #tpu.memory_space<vmem>>, vector<8x32xf32>
    %31 = arith.mulf %29, %13 : vector<32x8xf32>
    %cst_18 = arith.constant dense<0.000000e+00> : vector<8x8xf32>
    %32 = tpu.matmul %30, %31, %cst_18 {dimension_numbers = #tpu.dot_dimension_numbers<[1], [0], [0], [1], [0, 0, 1, 1], [], []>} : vector<8x32xf32>, vector<32x8xf32>, vector<8x8xf32> -> vector<8x8xf32>
    %c0_19 = arith.constant 0 : index
    %c0_20 = arith.constant 0 : index
    %33 = vector.load %arg8[%c0_19, %c0_20] : memref<8x8xf32, #tpu.memory_space<vmem>>, vector<8x8xf32>
    %cst_21 = arith.constant dense<0.000000e+00> : vector<8x8xf32>
    %34 = tpu.matmul %32, %33, %cst_21 {dimension_numbers = #tpu.dot_dimension_numbers<[1], [0], [0], [1], [0, 0, 1, 1], [], []>} : vector<8x8xf32>, vector<8x8xf32>, vector<8x8xf32> -> vector<8x8xf32>
    %c0_22 = arith.constant 0 : index
    %c0_23 = arith.constant 0 : index
    %35 = vector.load %arg9[%c0_22, %c0_23] : memref<1x8xf32, #tpu.memory_space<vmem>>, vector<1x8xf32>
    %36 = vector.broadcast %35 : vector<1x8xf32> to vector<8x8xf32>
    %37 = arith.addf %34, %36 : vector<8x8xf32>
    %38 = vector.extract_strided_slice %37 {offsets = [0, 0], sizes = [1, 8], strides = [1, 1]} : vector<8x8xf32> to vector<1x8xf32>
    %39 = vector.extract_strided_slice %37 {offsets = [1, 0], sizes = [1, 8], strides = [1, 1]} : vector<8x8xf32> to vector<1x8xf32>
    %40 = vector.extract_strided_slice %37 {offsets = [2, 0], sizes = [1, 8], strides = [1, 1]} : vector<8x8xf32> to vector<1x8xf32>
    %41 = vector.extract_strided_slice %37 {offsets = [3, 0], sizes = [1, 8], strides = [1, 1]} : vector<8x8xf32> to vector<1x8xf32>
    %42 = tpu.concatenate %38, %39, %40, %41 in 1 : vector<1x8xf32>, vector<1x8xf32>, vector<1x8xf32>, vector<1x8xf32> -> vector<1x32xf32>
    %43 = vector.extract_strided_slice %37 {offsets = [4, 0], sizes = [1, 8], strides = [1, 1]} : vector<8x8xf32> to vector<1x8xf32>
    %44 = vector.extract_strided_slice %37 {offsets = [5, 0], sizes = [1, 8], strides = [1, 1]} : vector<8x8xf32> to vector<1x8xf32>
    %45 = vector.extract_strided_slice %37 {offsets = [6, 0], sizes = [1, 8], strides = [1, 1]} : vector<8x8xf32> to vector<1x8xf32>
    %46 = vector.extract_strided_slice %37 {offsets = [7, 0], sizes = [1, 8], strides = [1, 1]} : vector<8x8xf32> to vector<1x8xf32>
    %47 = tpu.concatenate %43, %44, %45, %46 in 1 : vector<1x8xf32>, vector<1x8xf32>, vector<1x8xf32>, vector<1x8xf32> -> vector<1x32xf32>
    %48 = tpu.concatenate %42, %47 in 0 : vector<1x32xf32>, vector<1x32xf32> -> vector<2x32xf32>
    %c0_24 = arith.constant 0 : index
    %c0_25 = arith.constant 0 : index
    %49 = vector.load %arg10[%c0_24, %c0_25] : memref<32x32xf32, #tpu.memory_space<vmem>>, vector<32x32xf32>
    %cst_26 = arith.constant dense<0.000000e+00> : vector<2x32xf32>
    %50 = tpu.matmul %48, %49, %cst_26 {dimension_numbers = #tpu.dot_dimension_numbers<[1], [0], [0], [1], [0, 0, 1, 1], [], []>} : vector<2x32xf32>, vector<32x32xf32>, vector<2x32xf32> -> vector<2x32xf32>
    %c0_27 = arith.constant 0 : index
    %c0_28 = arith.constant 0 : index
    %51 = vector.load %arg1[%c0_27, %c0_28] : memref<2x10xf32, #tpu.memory_space<vmem>>, vector<2x10xf32>
    %c0_29 = arith.constant 0 : index
    %c0_30 = arith.constant 0 : index
    %52 = vector.load %arg11[%c0_29, %c0_30] : memref<10x32xf32, #tpu.memory_space<vmem>>, vector<10x32xf32>
    %cst_31 = arith.constant dense<0.000000e+00> : vector<2x32xf32>
    %53 = tpu.matmul %51, %52, %cst_31 {dimension_numbers = #tpu.dot_dimension_numbers<[1], [0], [0], [1], [0, 0, 1, 1], [], []>} : vector<2x10xf32>, vector<10x32xf32>, vector<2x32xf32> -> vector<2x32xf32>
    %54 = arith.addf %50, %53 : vector<2x32xf32>
    %c0_32 = arith.constant 0 : index
    %c0_33 = arith.constant 0 : index
    %55 = vector.load %arg12[%c0_32, %c0_33] : memref<1x32xf32, #tpu.memory_space<vmem>>, vector<1x32xf32>
    %56 = vector.broadcast %55 : vector<1x32xf32> to vector<2x32xf32>
    %57 = arith.addf %54, %56 : vector<2x32xf32>
    %cst_34 = arith.constant 0.000000e+00 : f32
    %58 = vector.broadcast %cst_34 : f32 to vector<2x32xf32>
    %59 = arith.maximumf %57, %58 : vector<2x32xf32>
    %c0_35 = arith.constant 0 : index
    %c0_36 = arith.constant 0 : index
    %60 = vector.load %arg13[%c0_35, %c0_36] : memref<32x16xf32, #tpu.memory_space<vmem>>, vector<32x16xf32>
    %cst_37 = arith.constant dense<0.000000e+00> : vector<2x16xf32>
    %61 = tpu.matmul %59, %60, %cst_37 {dimension_numbers = #tpu.dot_dimension_numbers<[1], [0], [0], [1], [0, 0, 1, 1], [], []>} : vector<2x32xf32>, vector<32x16xf32>, vector<2x16xf32> -> vector<2x16xf32>
    %c0_38 = arith.constant 0 : index
    %c0_39 = arith.constant 0 : index
    %62 = vector.load %arg14[%c0_38, %c0_39] : memref<1x16xf32, #tpu.memory_space<vmem>>, vector<1x16xf32>
    %63 = vector.broadcast %62 : vector<1x16xf32> to vector<2x16xf32>
    %64 = arith.addf %61, %63 : vector<2x16xf32>
    %cst_40 = arith.constant 0.000000e+00 : f32
    %65 = vector.broadcast %cst_40 : f32 to vector<2x16xf32>
    %66 = arith.maximumf %64, %65 : vector<2x16xf32>
    %c0_41 = arith.constant 0 : index
    %c0_42 = arith.constant 0 : index
    %67 = vector.load %arg15[%c0_41, %c0_42] : memref<16x8xf32, #tpu.memory_space<vmem>>, vector<16x8xf32>
    %cst_43 = arith.constant dense<0.000000e+00> : vector<2x8xf32>
    %68 = tpu.matmul %66, %67, %cst_43 {dimension_numbers = #tpu.dot_dimension_numbers<[1], [0], [0], [1], [0, 0, 1, 1], [], []>} : vector<2x16xf32>, vector<16x8xf32>, vector<2x8xf32> -> vector<2x8xf32>
    %c0_44 = arith.constant 0 : index
    %c0_45 = arith.constant 0 : index
    %69 = vector.load %arg16[%c0_44, %c0_45] : memref<1x8xf32, #tpu.memory_space<vmem>>, vector<1x8xf32>
    %70 = vector.broadcast %69 : vector<1x8xf32> to vector<2x8xf32>
    %71 = arith.addf %68, %70 : vector<2x8xf32>
    %c0_46 = arith.constant 0 : index
    %c0_47 = arith.constant 0 : index
    %72 = vector.load %arg17[%c0_46, %c0_47] : memref<2x8xf32, #tpu.memory_space<vmem>>, vector<2x8xf32>
    tpu.vector_store %arg17[%c0_46, %c0_47], %71 {strides = array<i32>} : memref<2x8xf32, #tpu.memory_space<vmem>>, vector<2x8xf32>,
    return
  }
}

</mosaic_0001>

<llo_original>
// kernel: tpu_custom_call.1
$region0: #{tpu_custom_call.1}
  #allocation0 [shape = 'u32[]', space=smem, size = 0x4, offset = 0x4, fixed_abs, tag = 'smem constant byte address 0x4 - core index']
  #allocation1 [shape = 'u32[72,128]{1,0:T(1,128)}', space=vmem, size = 0x9000, scoped, tag = 'internal scratch']
  %s0 = inlined_call_operand.vmem [shape: f32[8,8], index: 0, kind: input, shape index: {}]
  %s1 = inlined_call_operand.vmem [shape: f32[2,10], index: 1, kind: input, shape index: {}]
  %s2 = inlined_call_operand.vmem [shape: f32[32,8], index: 2, kind: input, shape index: {}]
  %s3 = inlined_call_operand.vmem [shape: f32[32,8], index: 3, kind: input, shape index: {}]
  %s4 = inlined_call_operand.vmem [shape: f32[32,32], index: 4, kind: input, shape index: {}]
  %s5 = inlined_call_operand.vmem [shape: f32[8,32], index: 5, kind: input, shape index: {}]
  %s6 = inlined_call_operand.vmem [shape: f32[8,24], index: 6, kind: input, shape index: {}]
  %s7 = inlined_call_operand.vmem [shape: f32[1,24], index: 7, kind: input, shape index: {}]
  %s8 = inlined_call_operand.vmem [shape: f32[8,8], index: 8, kind: input, shape index: {}]
  %s9 = inlined_call_operand.vmem [shape: f32[1,8], index: 9, kind: input, shape index: {}]
  %s10 = inlined_call_operand.vmem [shape: f32[32,32], index: 10, kind: input, shape index: {}]
  %s11 = inlined_call_operand.vmem [shape: f32[10,32], index: 11, kind: input, shape index: {}]
  %s12 = inlined_call_operand.vmem [shape: f32[1,32], index: 12, kind: input, shape index: {}]
  %s13 = inlined_call_operand.vmem [shape: f32[32,16], index: 13, kind: input, shape index: {}]
  %s14 = inlined_call_operand.vmem [shape: f32[1,16], index: 14, kind: input, shape index: {}]
  %s15 = inlined_call_operand.vmem [shape: f32[16,8], index: 15, kind: input, shape index: {}]
  %s16 = inlined_call_operand.vmem [shape: f32[1,8], index: 16, kind: input, shape index: {}]
  %s17 = inlined_call_operand.hbm [shape: f32[2,8], index: 17, kind: output, shape index: {}]
  %s18 = sld [smem:[#allocation0]]
  $region78: #{tpu_custom_call.1} parent=0
    _
  %s20 = ssub.s32 1, %s18
  %s21 = scalar_select 0, %s20, %s18
  $region1: #{tpu_custom_call.1} parent=0
    #allocation2 [shape = 'u8[1024]{0}', space=vmem, size = 0x400, scoped, tag = 'output window, operand 0, single buffered']
    #allocation3 [shape = 's32[1]{0}', space=sflag, size = 0x4, scoped, tag = 'scoped memory for tpu_custom_call.1']
    %22 = vsyncpa [#allocation3], 0
    // Predicated region
    $region2: #{tpu_custom_call.1} parent=1 // pred_check
      _
    $region3: #{tpu_custom_call.1} parent=1 // pred_check_branch
      %24 = sbr.rel (0) target = $region5
    $region4: #{tpu_custom_call.1} parent=1 // pred_region
      _
    $region5: #{tpu_custom_call.1} parent=1 // pred_fallthru
      _
    // Predicated region
    $region6: #{tpu_custom_call.1} parent=1 // pred_check
      _
    $region7: #{tpu_custom_call.1} parent=1 // pred_check_branch
      %26 = sbr.rel (0) target = $region9
    $region8: #{tpu_custom_call.1} parent=1 // pred_region
      _
    $region9: #{tpu_custom_call.1} parent=1 // pred_fallthru
      _
    // Predicated region
    $region10: #{tpu_custom_call.1} parent=1 // pred_check
      _
    $region11: #{tpu_custom_call.1} parent=1 // pred_check_branch
      %28 = sbr.rel (0) target = $region13
    $region12: #{tpu_custom_call.1} parent=1 // pred_region
      _
    $region13: #{tpu_custom_call.1} parent=1 // pred_fallthru
      _
    // Predicated region
    $region14: #{tpu_custom_call.1} parent=1 // pred_check
      _
    $region15: #{tpu_custom_call.1} parent=1 // pred_check_branch
      %30 = sbr.rel (0) target = $region17
    $region16: #{tpu_custom_call.1} parent=1 // pred_region
      _
    $region17: #{tpu_custom_call.1} parent=1 // pred_fallthru
      _
    // Predicated region
    $region18: #{tpu_custom_call.1} parent=1 // pred_check
      _
    $region19: #{tpu_custom_call.1} parent=1 // pred_check_branch
      %32 = sbr.rel (0) target = $region21
    $region20: #{tpu_custom_call.1} parent=1 // pred_region
      _
    $region21: #{tpu_custom_call.1} parent=1 // pred_fallthru
      _
    // Predicated region
    $region22: #{tpu_custom_call.1} parent=1 // pred_check
      _
    $region23: #{tpu_custom_call.1} parent=1 // pred_check_branch
      %34 = sbr.rel (0) target = $region25
    $region24: #{tpu_custom_call.1} parent=1 // pred_region
      _
    $region25: #{tpu_custom_call.1} parent=1 // pred_fallthru
      _
    // Predicated region
    $region26: #{tpu_custom_call.1} parent=1 // pred_check
      _
    $region27: #{tpu_custom_call.1} parent=1 // pred_check_branch
      %36 = sbr.rel (0) target = $region29
    $region28: #{tpu_custom_call.1} parent=1 // pred_region
      _
    $region29: #{tpu_custom_call.1} parent=1 // pred_fallthru
      _
    // Predicated region
    $region30: #{tpu_custom_call.1} parent=1 // pred_check
      _
    $region31: #{tpu_custom_call.1} parent=1 // pred_check_branch
      %38 = sbr.rel (0) target = $region33
    $region32: #{tpu_custom_call.1} parent=1 // pred_region
      _
    $region33: #{tpu_custom_call.1} parent=1 // pred_fallthru
      _
    // Predicated region
    $region34: #{tpu_custom_call.1} parent=1 // pred_check
      _
    $region35: #{tpu_custom_call.1} parent=1 // pred_check_branch
      %40 = sbr.rel (0) target = $region37
    $region36: #{tpu_custom_call.1} parent=1 // pred_region
      _
    $region37: #{tpu_custom_call.1} parent=1 // pred_fallthru
      _
    // Predicated region
    $region38: #{tpu_custom_call.1} parent=1 // pred_check
      _
    $region39: #{tpu_custom_call.1} parent=1 // pred_check_branch
      %42 = sbr.rel (0) target = $region41
    $region40: #{tpu_custom_call.1} parent=1 // pred_region
      _
    $region41: #{tpu_custom_call.1} parent=1 // pred_fallthru
      _
    // Predicated region
    $region42: #{tpu_custom_call.1} parent=1 // pred_check
      _
    $region43: #{tpu_custom_call.1} parent=1 // pred_check_branch
      %44 = sbr.rel (0) target = $region45
    $region44: #{tpu_custom_call.1} parent=1 // pred_region
      _
    $region45: #{tpu_custom_call.1} parent=1 // pred_fallthru
      _
    // Predicated region
    $region46: #{tpu_custom_call.1} parent=1 // pred_check
      _
    $region47: #{tpu_custom_call.1} parent=1 // pred_check_branch
      %46 = sbr.rel (0) target = $region49
    $region48: #{tpu_custom_call.1} parent=1 // pred_region
      _
    $region49: #{tpu_custom_call.1} parent=1 // pred_fallthru
      _
    // Predicated region
    $region50: #{tpu_custom_call.1} parent=1 // pred_check
      _
    $region51: #{tpu_custom_call.1} parent=1 // pred_check_branch
      %48 = sbr.rel (0) target = $region53
    $region52: #{tpu_custom_call.1} parent=1 // pred_region
      _
    $region53: #{tpu_custom_call.1} parent=1 // pred_fallthru
      _
    // Predicated region
    $region54: #{tpu_custom_call.1} parent=1 // pred_check
      _
    $region55: #{tpu_custom_call.1} parent=1 // pred_check_branch
      %50 = sbr.rel (0) target = $region57
    $region56: #{tpu_custom_call.1} parent=1 // pred_region
      _
    $region57: #{tpu_custom_call.1} parent=1 // pred_fallthru
      _
    // Predicated region
    $region58: #{tpu_custom_call.1} parent=1 // pred_check
      _
    $region59: #{tpu_custom_call.1} parent=1 // pred_check_branch
      %52 = sbr.rel (0) target = $region61
    $region60: #{tpu_custom_call.1} parent=1 // pred_region
      _
    $region61: #{tpu_custom_call.1} parent=1 // pred_fallthru
      _
    // Predicated region
    $region62: #{tpu_custom_call.1} parent=1 // pred_check
      _
    $region63: #{tpu_custom_call.1} parent=1 // pred_check_branch
      %54 = sbr.rel (0) target = $region65
    $region64: #{tpu_custom_call.1} parent=1 // pred_region
      _
    $region65: #{tpu_custom_call.1} parent=1 // pred_fallthru
      _
    // Predicated region
    $region66: #{tpu_custom_call.1} parent=1 // pred_check
      _
    $region67: #{tpu_custom_call.1} parent=1 // pred_check_branch
      %56 = sbr.rel (0) target = $region69
    $region68: #{tpu_custom_call.1} parent=1 // pred_region
      _
    $region69: #{tpu_custom_call.1} parent=1 // pred_fallthru
      _
    %v57 = vld [vmem:[%s0] sm:$0xff]
    %v58 = vld [vmem:[%s6] sm:$0xff]
    %v59 = vld [vmem:[%s7] sm:$0x1]
    %v61 = vperm.slane %v59, 0
    %vm63 = vcmask 64512
    %v65 = vsel %vm63, %v57, 0
    %67 = vmatpush.msra.mxu0 0.0
    %68 = vmatpush.msra.mxu0 0.0
    %69 = vmatpush.msra.mxu0 0.0
    %70 = vmatpush.msra.mxu0 0.0
    %71 = vmatpush.msra.mxu0 0.0
    %72 = vmatpush.msra.mxu0 0.0
    %73 = vmatpush.msra.mxu0 0.0
    %74 = vmatpush.msra.mxu0 0.0
    %75 = vmatpush.msra.mxu0 0.0
    %76 = vmatpush.msra.mxu0 0.0
    %77 = vmatpush.msra.mxu0 0.0
    %78 = vmatpush.msra.mxu0 0.0
    %79 = vmatpush.msra.mxu0 0.0
    %80 = vmatpush.msra.mxu0 0.0
    %81 = vmatpush.msra.mxu0 0.0
    %82 = vmatpush.msra.mxu0 %v58
    %83 = vmatmul.f32.gmra.mxu0 %v65
    %v84 = vpop.f32.mrf.mxu0
    %v85 = vadd.f32 %v61, %v84
    %86 = vdwg.mxu0
    %v87 = vld [vmem:[%s2] sm:$0xff]
    %v88 = vld [vmem:[%s2 + $0x8] sm:$0xff]
    %v89 = vld [vmem:[%s2 + $0x10] sm:$0xff]
    %v90 = vld [vmem:[%s2 + $0x18] sm:$0xff]
    %v92 = vsel %vm63, %v87, 0
    %v95 = vsel %vm63, %v88, 0
    %v98 = vsel %vm63, %v89, 0
    %v101 = vsel %vm63, %v90, 0
    %103 = vmatpush.msra.mxu0 0.0
    %104 = vmatpush.msra.mxu0 0.0
    %105 = vmatpush.msra.mxu0 0.0
    %106 = vmatpush.msra.mxu0 0.0
    %107 = vmatpush.msra.mxu0 0.0
    %108 = vmatpush.msra.mxu0 0.0
    %109 = vmatpush.msra.mxu0 0.0
    %110 = vmatpush.msra.mxu0 0.0
    %111 = vmatpush.msra.mxu0 0.0
    %112 = vmatpush.msra.mxu0 0.0
    %113 = vmatpush.msra.mxu0 0.0
    %114 = vmatpush.msra.mxu0 0.0
    %115 = vmatpush.msra.mxu0 0.0
    %116 = vmatpush.msra.mxu0 0.0
    %117 = vmatpush.msra.mxu0 0.0
    %118 = vmatpush.msra.mxu0 %v85
    %119 = vmatmul.f32.gmra.mxu0 %v92
    %v120 = vpop.f32.mrf.mxu0
    %v121 = vadd.f32 0.0, %v120
    %122 = vmatmul.f32.gmra.mxu0 %v95
    %v123 = vpop.f32.mrf.mxu0
    %v124 = vadd.f32 0.0, %v123
    %125 = vmatmul.f32.gmra.mxu0 %v98
    %v126 = vpop.f32.mrf.mxu0
    %v127 = vadd.f32 0.0, %v126
    %128 = vmatmul.f32.gmra.mxu0 %v101
    %v129 = vpop.f32.mrf.mxu0
    %v130 = vadd.f32 0.0, %v129
    %131 = vdwg.mxu0
    %v132 = vld [vmem:[%s3] sm:$0xff]
    %v133 = vld [vmem:[%s3 + $0x8] sm:$0xff]
    %v134 = vld [vmem:[%s3 + $0x10] sm:$0xff]
    %v135 = vld [vmem:[%s3 + $0x18] sm:$0xff]
    %137 = vrot.lane.b32.xlu0 %v85, 120
    %v138 = vpop.permute.xlu0 %137
    %v141 = vsel %vm63, %v132, 0
    %v144 = vsel %vm63, %v133, 0
    %v147 = vsel %vm63, %v134, 0
    %v150 = vsel %vm63, %v135, 0
    %152 = vmatpush.msra.mxu0 0.0
    %153 = vmatpush.msra.mxu0 0.0
    %154 = vmatpush.msra.mxu0 0.0
    %155 = vmatpush.msra.mxu0 0.0
    %156 = vmatpush.msra.mxu0 0.0
    %157 = vmatpush.msra.mxu0 0.0
    %158 = vmatpush.msra.mxu0 0.0
    %159 = vmatpush.msra.mxu0 0.0
    %160 = vmatpush.msra.mxu0 0.0
    %161 = vmatpush.msra.mxu0 0.0
    %162 = vmatpush.msra.mxu0 0.0
    %163 = vmatpush.msra.mxu0 0.0
    %164 = vmatpush.msra.mxu0 0.0
    %165 = vmatpush.msra.mxu0 0.0
    %166 = vmatpush.msra.mxu0 0.0
    %167 = vmatpush.msra.mxu0 %v138
    %168 = vmatmul.f32.gmra.mxu0 %v141
    %v169 = vpop.f32.mrf.mxu0
    %v170 = vadd.f32 0.0, %v169
    %171 = vmatmul.f32.gmra.mxu0 %v144
    %v172 = vpop.f32.mrf.mxu0
    %v173 = vadd.f32 0.0, %v172
    %174 = vmatmul.f32.gmra.mxu0 %v147
    %v175 = vpop.f32.mrf.mxu0
    %v176 = vadd.f32 0.0, %v175
    %177 = vmatmul.f32.gmra.mxu0 %v150
    %v178 = vpop.f32.mrf.mxu0
    %v179 = vadd.f32 0.0, %v178
    %180 = vdwg.mxu0
    %v181 = vmul.f32 %v121, %v170
    %v182 = vmul.f32 %v124, %v173
    %v183 = vmul.f32 %v127, %v176
    %v184 = vmul.f32 %v130, %v179
    %189 = vrot.lane.b32.xlu0 %v181, 124
    %v190 = vpop.permute.xlu0 %189
    %191 = vrot.lane.b32.xlu0 %v182, 124
    %v192 = vpop.permute.xlu0 %191
    %193 = vrot.lane.b32.xlu0 %v183, 124
    %v194 = vpop.permute.xlu0 %193
    %195 = vrot.lane.b32.xlu0 %v184, 124
    %v196 = vpop.permute.xlu0 %195
    %v201 = vadd.f32 %v181, %v190
    %v202 = vadd.f32 %v182, %v192
    %v203 = vadd.f32 %v183, %v194
    %v204 = vadd.f32 %v184, %v196
    %vm205 = vcmask 31744
    %v206 = vsel %vm205, %v201, -inf
    %207 = vmax.xlane.f32.xlu0 %v206
    %v208 = vpop.xlane.xlu0 %207
    %v209 = vsel %vm205, %v202, -inf
    %210 = vmax.xlane.f32.xlu0 %v209
    %v211 = vpop.xlane.xlu0 %210
    %v212 = vsel %vm205, %v203, -inf
    %213 = vmax.xlane.f32.xlu0 %v212
    %v214 = vpop.xlane.xlu0 %213
    %v215 = vsel %vm205, %v204, -inf
    %216 = vmax.xlane.f32.xlu0 %v215
    %v217 = vpop.xlane.xlu0 %216
    %v218 = vmax.f32 %v208, %v211
    %v219 = vmax.f32 %v214, %v217
    %v220 = vmax.f32 %v218, %v219
    %v221 = vrot.slane %v220, 4
    %v222 = vmax.f32 %v220, %v221
    %v223 = vrot.slane %v222, 2
    %v224 = vmax.f32 %v222, %v223
    %v225 = vrot.slane %v224, 1
    %v226 = vmax.f32 %v224, %v225
    %v227 = vsub.f32 %v201, %v226
    %v228 = vsub.f32 %v202, %v226
    %v229 = vsub.f32 %v203, %v226
    %v230 = vsub.f32 %v204, %v226
    %v231 = vmul.f32 %v227, 1.442695
    %v232 = vpow.pop %v231
    %v233 = vmul.f32 %v228, 1.442695
    %v234 = vpow.pop %v233
    %v235 = vmul.f32 %v229, 1.442695
    %v236 = vpow.pop %v235
    %v237 = vmul.f32 %v230, 1.442695
    %v238 = vpow.pop %v237
    %v239 = vld [vmem:[%s4] sm:$0xff]
    %v240 = vld [vmem:[%s4 + $0x8] sm:$0xff]
    %v241 = vld [vmem:[%s4 + $0x10] sm:$0xff]
    %v242 = vld [vmem:[%s4 + $0x18] sm:$0xff]
    %vm243 = vcmask 261120
    %v245 = vsel %vm243, %v239, 0
    %v248 = vsel %vm243, %v240, 0
    %v251 = vsel %vm243, %v241, 0
    %v254 = vsel %vm243, %v242, 0
    %256 = vmatpush.msra.mxu0 0.0
    %257 = vmatpush.msra.mxu0 0.0
    %258 = vmatpush.msra.mxu0 0.0
    %259 = vmatpush.msra.mxu0 0.0
    %260 = vmatpush.msra.mxu0 0.0
    %261 = vmatpush.msra.mxu0 0.0
    %262 = vmatpush.msra.mxu0 0.0
    %263 = vmatpush.msra.mxu0 0.0
    %264 = vmatpush.msra.mxu0 0.0
    %265 = vmatpush.msra.mxu0 0.0
    %266 = vmatpush.msra.mxu0 0.0
    %267 = vmatpush.msra.mxu0 0.0
    %268 = vmatpush.msra.mxu0 %v238
    %269 = vmatpush.msra.mxu0 %v236
    %270 = vmatpush.msra.mxu0 %v234
    %271 = vmatpush.msra.mxu0 %v232
    %272 = vmatmul.f32.gmra.mxu0 %v245
    %v273 = vpop.f32.mrf.mxu0
    %v274 = vadd.f32 0.0, %v273
    %275 = vmatmul.f32.gmra.mxu0 %v248
    %v276 = vpop.f32.mrf.mxu0
    %v277 = vadd.f32 0.0, %v276
    %278 = vmatmul.f32.gmra.mxu0 %v251
    %v279 = vpop.f32.mrf.mxu0
    %v280 = vadd.f32 0.0, %v279
    %281 = vmatmul.f32.gmra.mxu0 %v254
    %v282 = vpop.f32.mrf.mxu0
    %v283 = vadd.f32 0.0, %v282
    %284 = vdwg.mxu0
    %v285 = vrcp.pop %v274
    %v286 = vrcp.pop %v277
    %v287 = vrcp.pop %v280
    %v288 = vrcp.pop %v283
    %v289 = vmul.f32 %v232, %v285
    %v290 = vmul.f32 %v234, %v286
    %v291 = vmul.f32 %v236, %v287
    %v292 = vmul.f32 %v238, %v288
    %297 = vrot.lane.b32.xlu0 %v289, 4
    %v298 = vpop.permute.xlu0 %297
    %299 = vrot.lane.b32.xlu0 %v290, 4
    %v300 = vpop.permute.xlu0 %299
    %301 = vrot.lane.b32.xlu0 %v291, 4
    %v302 = vpop.permute.xlu0 %301
    %303 = vrot.lane.b32.xlu0 %v292, 4
    %v304 = vpop.permute.xlu0 %303
    %v309 = vsel %vm205, %v289, %v298
    %v310 = vsel %vm205, %v290, %v300
    %v311 = vsel %vm205, %v291, %v302
    %v312 = vsel %vm205, %v292, %v304
    %v313 = vld [vmem:[%s5] sm:$0xff]
    %318 = vrot.lane.b32.xlu0 %v170, 120
    %v319 = vpop.permute.xlu0 %318
    %320 = vrot.lane.b32.xlu0 %v173, 120
    %v321 = vpop.permute.xlu0 %320
    %322 = vrot.lane.b32.xlu0 %v176, 120
    %v323 = vpop.permute.xlu0 %322
    %324 = vrot.lane.b32.xlu0 %v179, 120
    %v325 = vpop.permute.xlu0 %324
    %v330 = vmul.f32 %v309, %v319
    %v331 = vmul.f32 %v310, %v321
    %v332 = vmul.f32 %v311, %v323
    %v333 = vmul.f32 %v312, %v325
    %v335 = vsel %vm243, %v313, 0
    %337 = vmatpush.msra.mxu0 0.0
    %338 = vmatpush.msra.mxu0 0.0
    %339 = vmatpush.msra.mxu0 0.0
    %340 = vmatpush.msra.mxu0 0.0
    %341 = vmatpush.msra.mxu0 0.0
    %342 = vmatpush.msra.mxu0 0.0
    %343 = vmatpush.msra.mxu0 0.0
    %344 = vmatpush.msra.mxu0 0.0
    %345 = vmatpush.msra.mxu0 0.0
    %346 = vmatpush.msra.mxu0 0.0
    %347 = vmatpush.msra.mxu0 0.0
    %348 = vmatpush.msra.mxu0 0.0
    %349 = vmatpush.msra.mxu0 %v333
    %350 = vmatpush.msra.mxu0 %v332
    %351 = vmatpush.msra.mxu0 %v331
    %352 = vmatpush.msra.mxu0 %v330
    %353 = vmatmul.f32.gmra.mxu0 %v335
    %v354 = vpop.f32.mrf.mxu0
    %v355 = vadd.f32 0.0, %v354
    %356 = vdwg.mxu0
    %v357 = vld [vmem:[%s8] sm:$0xff]
    %v358 = vld [vmem:[%s9] sm:$0x1]
    %v360 = vperm.slane %v358, 0
    %v363 = vsel %vm63, %v355, 0
    %365 = vmatpush.msra.mxu0 0.0
    %366 = vmatpush.msra.mxu0 0.0
    %367 = vmatpush.msra.mxu0 0.0
    %368 = vmatpush.msra.mxu0 0.0
    %369 = vmatpush.msra.mxu0 0.0
    %370 = vmatpush.msra.mxu0 0.0
    %371 = vmatpush.msra.mxu0 0.0
    %372 = vmatpush.msra.mxu0 0.0
    %373 = vmatpush.msra.mxu0 0.0
    %374 = vmatpush.msra.mxu0 0.0
    %375 = vmatpush.msra.mxu0 0.0
    %376 = vmatpush.msra.mxu0 0.0
    %377 = vmatpush.msra.mxu0 0.0
    %378 = vmatpush.msra.mxu0 0.0
    %379 = vmatpush.msra.mxu0 0.0
    %380 = vmatpush.msra.mxu0 %v357
    %381 = vmatmul.f32.gmra.mxu0 %v363
    %v382 = vpop.f32.mrf.mxu0
    %v383 = vadd.f32 %v360, %v382
    %384 = vdwg.mxu0
    %v386 = vrot.slane %v383, 1
    %387 = vrot.lane.b32.xlu0 %v386, 8
    %v388 = vpop.permute.xlu0 %387
    %v390 = vrot.slane %v383, 2
    %391 = vrot.lane.b32.xlu0 %v390, 16
    %v392 = vpop.permute.xlu0 %391
    %v394 = vrot.slane %v383, 3
    %395 = vrot.lane.b32.xlu0 %v394, 24
    %v396 = vpop.permute.xlu0 %395
    %v398 = vsel %vm63, %v383, %v388
    %vm399 = vcmask 130048
    %v400 = vsel %vm399, %v398, %v392
    %vm401 = vcmask 195584
    %v402 = vsel %vm401, %v400, %v396
    %v404 = vrot.slane %v402, 3
    %vm406 = vcmask 1040384
    %v407 = vsel %vm406, %v402, %v404
    %v408 = vld [vmem:[%s10] sm:$0xff]
    %v409 = vld [vmem:[%s10 + $0x8] sm:$0xff]
    %v410 = vld [vmem:[%s10 + $0x10] sm:$0xff]
    %v411 = vld [vmem:[%s10 + $0x18] sm:$0xff]
    %v412 = vld [vmem:[%s1] sm:$0x3]
    %v413 = vld [vmem:[%s11] sm:$0xff]
    %v414 = vld [vmem:[%s11 + $0x8] sm:$0x3]
    %vm415 = vcmask 80896
    %v417 = vsel %vm415, %v412, 0
    %vm419 = vcmask 1041408
    %v421 = vsel %vm419, %v414, 0
    %423 = vmatpush.msra.mxu0 0.0
    %424 = vmatpush.msra.mxu0 0.0
    %425 = vmatpush.msra.mxu0 0.0
    %426 = vmatpush.msra.mxu0 0.0
    %427 = vmatpush.msra.mxu0 0.0
    %428 = vmatpush.msra.mxu0 0.0
    %429 = vmatpush.msra.mxu0 0.0
    %430 = vmatpush.msra.mxu0 0.0
    %431 = vmatpush.msra.mxu0 0.0
    %432 = vmatpush.msra.mxu0 0.0
    %433 = vmatpush.msra.mxu0 0.0
    %434 = vmatpush.msra.mxu0 0.0
    %435 = vmatpush.msra.mxu0 0.0
    %436 = vmatpush.msra.mxu0 0.0
    %437 = vmatpush.msra.mxu0 %v421
    %438 = vmatpush.msra.mxu0 %v413
    %439 = vmatmul.f32.gmra.mxu0 %v417
    %v440 = vpop.f32.mrf.mxu0
    %v441 = vadd.f32 0.0, %v440
    %442 = vdwg.mxu0
    %v444 = vsel %vm243, %v407, 0
    %446 = vmatpush.msra.mxu0 0.0
    %447 = vmatpush.msra.mxu0 0.0
    %448 = vmatpush.msra.mxu0 0.0
    %449 = vmatpush.msra.mxu0 0.0
    %450 = vmatpush.msra.mxu0 0.0
    %451 = vmatpush.msra.mxu0 0.0
    %452 = vmatpush.msra.mxu0 0.0
    %453 = vmatpush.msra.mxu0 0.0
    %454 = vmatpush.msra.mxu0 0.0
    %455 = vmatpush.msra.mxu0 0.0
    %456 = vmatpush.msra.mxu0 0.0
    %457 = vmatpush.msra.mxu0 0.0
    %458 = vmatpush.msra.mxu0 %v411
    %459 = vmatpush.msra.mxu0 %v410
    %460 = vmatpush.msra.mxu0 %v409
    %461 = vmatpush.msra.mxu0 %v408
    %462 = vmatmul.f32.gmra.mxu0 %v444
    %v463 = vpop.f32.mrf.mxu0
    %v464 = vadd.f32 %v441, %v463
    %465 = vdwg.mxu0
    %v466 = vld [vmem:[%s12] sm:$0x1]
    %v468 = vperm.slane %v466, 0
    %v470 = vadd.f32 %v464, %v468
    %v471 = vmax.f32 %v470, 0.0
    %v472 = vld [vmem:[%s13] sm:$0xff]
    %v473 = vld [vmem:[%s13 + $0x8] sm:$0xff]
    %v474 = vld [vmem:[%s13 + $0x10] sm:$0xff]
    %v475 = vld [vmem:[%s13 + $0x18] sm:$0xff]
    %v476 = vld [vmem:[%s14] sm:$0x1]
    %v478 = vperm.slane %v476, 0
    %v481 = vsel %vm243, %v471, 0
    %483 = vmatpush.msra.mxu0 0.0
    %484 = vmatpush.msra.mxu0 0.0
    %485 = vmatpush.msra.mxu0 0.0
    %486 = vmatpush.msra.mxu0 0.0
    %487 = vmatpush.msra.mxu0 0.0
    %488 = vmatpush.msra.mxu0 0.0
    %489 = vmatpush.msra.mxu0 0.0
    %490 = vmatpush.msra.mxu0 0.0
    %491 = vmatpush.msra.mxu0 0.0
    %492 = vmatpush.msra.mxu0 0.0
    %493 = vmatpush.msra.mxu0 0.0
    %494 = vmatpush.msra.mxu0 0.0
    %495 = vmatpush.msra.mxu0 %v475
    %496 = vmatpush.msra.mxu0 %v474
    %497 = vmatpush.msra.mxu0 %v473
    %498 = vmatpush.msra.mxu0 %v472
    %499 = vmatmul.f32.gmra.mxu0 %v481
    %v500 = vpop.f32.mrf.mxu0
    %v501 = vadd.f32 %v478, %v500
    %502 = vdwg.mxu0
    %v503 = vmax.f32 %v501, 0.0
    %v504 = vld [vmem:[%s15] sm:$0xff]
    %v505 = vld [vmem:[%s15 + $0x8] sm:$0xff]
    %v506 = vld [vmem:[%s16] sm:$0x1]
    %v508 = vperm.slane %v506, 0
    %v511 = vsel %vm399, %v503, 0
    %513 = vmatpush.msra.mxu0 0.0
    %514 = vmatpush.msra.mxu0 0.0
    %515 = vmatpush.msra.mxu0 0.0
    %516 = vmatpush.msra.mxu0 0.0
    %517 = vmatpush.msra.mxu0 0.0
    %518 = vmatpush.msra.mxu0 0.0
    %519 = vmatpush.msra.mxu0 0.0
    %520 = vmatpush.msra.mxu0 0.0
    %521 = vmatpush.msra.mxu0 0.0
    %522 = vmatpush.msra.mxu0 0.0
    %523 = vmatpush.msra.mxu0 0.0
    %524 = vmatpush.msra.mxu0 0.0
    %525 = vmatpush.msra.mxu0 0.0
    %526 = vmatpush.msra.mxu0 0.0
    %527 = vmatpush.msra.mxu0 %v505
    %528 = vmatpush.msra.mxu0 %v504
    %529 = vmatmul.f32.gmra.mxu0 %v511
    %v530 = vpop.f32.mrf.mxu0
    %v531 = vadd.f32 %v508, %v530
    %532 = vdwg.mxu0
    %vm533 = vcmask 58368
    %534 = vst.msk [vmem:[#allocation2] sm:$0x3] %vm533, %v531
    // Predicated region
    $region70: #{tpu_custom_call.1} parent=1 // pred_check
      _
    $region71: #{tpu_custom_call.1} parent=1 // pred_check_branch
      %536 = sbr.rel (0) target = $region73
    $region72: #{tpu_custom_call.1} parent=1 // pred_region
      %538 = vsyncadd [#allocation3], 0
      %s540 = sshll.u32 [#allocation2], 4
      %s541 = int_to_ptr.vmem [resolvable:$true] %s540
      %s542 = sshll.u32 %s17, 4
      %s543 = int_to_ptr.hbm [resolvable:$true] %s542
      %545 = dma.vmem_to_hbm [thread:$0]  %s541, 32, %s543, [#allocation3]
    $region73: #{tpu_custom_call.1} parent=1 // pred_fallthru
      _
    // Predicated region
    $region74: #{tpu_custom_call.1} parent=1 // pred_check
      _
    $region75: #{tpu_custom_call.1} parent=1 // pred_check_branch
      %547 = sbr.rel (0) target = $region77
    $region76: #{tpu_custom_call.1} parent=1 // pred_region
      %549 = dma.done [#allocation3], 32
    $region77: #{tpu_custom_call.1} parent=1 // pred_fallthru
      _
    %550 = vsyncpa [#allocation3], 1

</llo_original>
